<compile_context>
chip_gen: v7x
topology: tpu7x:2x2x1
jax: 0.10.0
libtpu: 0.0.40
codegen_flags: <defaults>
</compile_context>

<pallas_src>
import jax
import jax.numpy as jnp
from jax.experimental import pallas as pl
from jax.experimental.pallas import tpu as pltpu


def _round_up(n: int, m: int) -> int:
    return ((n + m - 1) // m) * m


def deepsic_block_kernel(xT_ref, w1t_ref, b1_ref, w2t_ref, b2_ref, o_ref):
    """One batch tile: fc1 -> ReLU -> fc2 -> softmax, batch on lanes.

    Shapes per grid step:
      xT_ref : (K_pad, TB)   features on sublanes, batch on lanes
      w1t_ref: (H, K_pad)    fc1 weight (PyTorch (out, in) layout, zero-padded K)
      b1_ref : (H, 1)        f32
      w2t_ref: (C, H)        fc2 weight (PyTorch (out, in) layout)
      b2_ref : (C, 1)        f32
      o_ref  : (C, TB)       f32 softmax probabilities (lane-dense)
    """
    x = xT_ref[...]                       # matmul operand dtype (f32 or bf16)

    # fc1 + ReLU : (H, K_pad) @ (K_pad, TB) -> (H, TB), f32 MXU accumulation.
    h = jnp.dot(w1t_ref[...], x, preferred_element_type=jnp.float32)
    h = jnp.maximum(h + b1_ref[...], 0.0)

    # fc2 : (C, H) @ (H, TB) -> (C, TB). Cast activations to the matmul
    # operand dtype (no-op in the f32 path); accumulate in f32.
    logits = jnp.dot(
        w2t_ref[...], h.astype(w2t_ref.dtype), preferred_element_type=jnp.float32
    ) + b2_ref[...]

    # Numerically-stable softmax over the (small) class axis, with explicit
    # unrolled row combines (C is tiny and static) -- stays on the VPU, no
    # lane reductions needed because the batch lives on lanes.
    num_classes = logits.shape[0]
    rows = [logits[i:i + 1, :] for i in range(num_classes)]   # each (1, TB)
    m = rows[0]
    for r in rows[1:]:
        m = jnp.maximum(m, r)
    e = jnp.exp(logits - m)                                   # (C, TB)
    denom = e[0:1, :]
    for i in range(1, num_classes):
        denom = denom + e[i:i + 1, :]
    o_ref[...] = (e * (1.0 / denom)).astype(o_ref.dtype)


def deepsic_block_forward(x, w1, b1, w2, b2, *, block_batch=1024,
                          matmul_dtype=jnp.float32):
    """
    x  : (B, linear_input)      float32
    w1 : (linear_input, hidden) fc1 weight (transposed vs. PyTorch's nn.Linear)
    b1 : (hidden,) or (1, hidden)
    w2 : (hidden, num_classes)
    b2 : (num_classes,) or (1, num_classes)
    returns (B, num_classes) softmax probabilities, float32
    """
    B, K = x.shape
    H = w1.shape[1]
    C = w2.shape[1]

    # Alignment: features padded to a multiple of 32 (8-sublane f32 / 16-sublane
    # bf16 friendly); batch tile a multiple of 128 (lane-dense output stores).
    K_pad = _round_up(K, 32)
    TB = min(_round_up(block_batch, 128), _round_up(B, 128))
    B_pad = _round_up(B, TB)

    # Layout plumbing (one-time, outside the kernel): batch-on-lanes transpose,
    # zero-padding, and PyTorch-native (out_features, in_features) weights.
    xT = jnp.pad(x.T, ((0, K_pad - K), (0, B_pad - B))).astype(matmul_dtype)
    w1t = jnp.pad(w1.T, ((0, 0), (0, K_pad - K))).astype(matmul_dtype)  # (H, K_pad)
    w2t = w2.T.astype(matmul_dtype)                                     # (C, H)
    b1c = jnp.reshape(b1, (-1,)).astype(jnp.float32).reshape(H, 1)
    b2c = jnp.reshape(b2, (-1,)).astype(jnp.float32).reshape(C, 1)

    grid = (pl.cdiv(B_pad, TB),)

    out = pl.pallas_call(
        deepsic_block_kernel,
        out_shape=jax.ShapeDtypeStruct((C, B_pad), jnp.float32),
        grid=grid,
        in_specs=[
            pl.BlockSpec((K_pad, TB), lambda i: (0, i)),   # x tile, pipelined
            pl.BlockSpec((H, K_pad), lambda i: (0, 0)),    # weights stay VMEM-resident
            pl.BlockSpec((H, 1), lambda i: (0, 0)),
            pl.BlockSpec((C, H), lambda i: (0, 0)),
            pl.BlockSpec((C, 1), lambda i: (0, 0)),
        ],
        out_specs=pl.BlockSpec((C, TB), lambda i: (0, i)),
        compiler_params=pltpu.CompilerParams(
            dimension_semantics=("parallel",),
        ),
    )(xT, w1t, b1c, w2t, b2c)

    # Strip batch padding and return PyTorch-style (B, num_classes).
    return out[:, :B].T


def reference_forward(x, w1, b1, w2, b2):
    h = jnp.maximum(x @ w1 + jnp.reshape(b1, (1, -1)), 0.0)
    logits = h @ w2 + jnp.reshape(b2, (1, -1))
    return jax.nn.softmax(logits, axis=-1)


if __name__ == "__main__":
    # Module hyperparameters (QPSK example).
    modulation_type = "QPSK"
    num_users = 4
    num_ant = 4
    hidden_dim = 32

    num_classes = 2 if modulation_type == "BPSK" else 4
    rx_size = num_ant if modulation_type == "BPSK" else 2 * num_ant
    linear_input = rx_size + (num_classes - 1) * (num_users - 1)  # 8 + 9 = 17

    key = jax.random.PRNGKey(0)
    kx, kw1, kb1, kw2, kb2, kx2 = jax.random.split(key, 6)

    w1 = jax.random.normal(kw1, (linear_input, hidden_dim), jnp.float32) * 0.1
    b1 = jax.random.normal(kb1, (1, hidden_dim), jnp.float32) * 0.1
    w2 = jax.random.normal(kw2, (hidden_dim, num_classes), jnp.float32) * 0.1
    b2 = jax.random.normal(kb2, (1, num_classes), jnp.float32) * 0.1

    # --- small batch, f32 path (single grid step, padded tile) ---
    batch = 8
    x = jax.random.normal(kx, (batch, linear_input), jnp.float32)
    out = jax.block_until_ready(deepsic_block_forward(x, w1, b1, w2, b2))
    ref = reference_forward(x, w1, b1, w2, b2)
    assert out.shape == (batch, num_classes)
    assert jnp.allclose(out, ref, atol=1e-5, rtol=1e-5)
    assert jnp.allclose(jnp.sum(out, axis=-1), 1.0, atol=1e-5)

    # --- larger batch exercising the batch grid (multiple tiles + ragged tail) ---
    batch2 = 300
    x2 = jax.random.normal(kx2, (batch2, linear_input), jnp.float32)
    out2 = jax.block_until_ready(
        deepsic_block_forward(x2, w1, b1, w2, b2, block_batch=128)
    )
    ref2 = reference_forward(x2, w1, b1, w2, b2)
    assert out2.shape == (batch2, num_classes)
    assert jnp.allclose(out2, ref2, atol=1e-5, rtol=1e-5)

    # --- bf16 matmul-operand path (f32 accumulate, f32 bias/ReLU/softmax) ---
    out3 = jax.block_until_ready(
        deepsic_block_forward(x2, w1, b1, w2, b2, block_batch=128,
                              matmul_dtype=jnp.bfloat16)
    )
    assert jnp.allclose(out3, ref2, atol=3e-2, rtol=3e-2)
    assert jnp.allclose(jnp.sum(out3, axis=-1), 1.0, atol=1e-2)

    print("KERNEL_OK")
</pallas_src>

<mosaic_0001>
module attributes {stable_mosaic.version = 11 : i64} {
  func.func @deepsic_block_kernel(%arg0: i32, %arg1: memref<32x128xf32, #tpu.memory_space<vmem>>, %arg2: memref<32x32xf32, #tpu.memory_space<vmem>>, %arg3: memref<32x1xf32, #tpu.memory_space<vmem>>, %arg4: memref<4x32xf32, #tpu.memory_space<vmem>>, %arg5: memref<4x1xf32, #tpu.memory_space<vmem>>, %arg6: memref<4x128xf32, #tpu.memory_space<vmem>>) attributes {dimension_semantics = [#tpu.dimension_semantics<parallel>], iteration_bounds = array<i64: 1>, scalar_prefetch = 0 : i64, scratch_operands = 0 : i64, tpu.core_type = #tpu.core_type<tc>, window_params = [{transform_indices = @transform_0, window_bounds = array<i64: 32, 128>}, {pipeline_mode = #tpu.pipeline_mode<synchronous>, transform_indices = @transform_1, window_bounds = array<i64: 32, 32>}, {pipeline_mode = #tpu.pipeline_mode<synchronous>, transform_indices = @transform_2, window_bounds = array<i64: 32, 1>}, {pipeline_mode = #tpu.pipeline_mode<synchronous>, transform_indices = @transform_3, window_bounds = array<i64: 4, 32>}, {pipeline_mode = #tpu.pipeline_mode<synchronous>, transform_indices = @transform_4, window_bounds = array<i64: 4, 1>}, {transform_indices = @transform_5, window_bounds = array<i64: 4, 128>}]} {
    %c0 = arith.constant 0 : index
    %c0_0 = arith.constant 0 : index
    %0 = vector.load %arg1[%c0, %c0_0] : memref<32x128xf32, #tpu.memory_space<vmem>>, vector<32x128xf32>
    %c0_1 = arith.constant 0 : index
    %c0_2 = arith.constant 0 : index
    %1 = vector.load %arg2[%c0_1, %c0_2] : memref<32x32xf32, #tpu.memory_space<vmem>>, vector<32x32xf32>
    %cst = arith.constant dense<0.000000e+00> : vector<32x128xf32>
    %2 = tpu.matmul %1, %0, %cst {dimension_numbers = #tpu.dot_dimension_numbers<[1], [0], [0], [1], [0, 0, 1, 1], [], []>} : vector<32x32xf32>, vector<32x128xf32>, vector<32x128xf32> -> vector<32x128xf32>
    %c0_3 = arith.constant 0 : index
    %c0_4 = arith.constant 0 : index
    %3 = vector.load %arg3[%c0_3, %c0_4] : memref<32x1xf32, #tpu.memory_space<vmem>>, vector<32x1xf32>
    %4 = vector.broadcast %3 : vector<32x1xf32> to vector<32x128xf32>
    %5 = arith.addf %2, %4 : vector<32x128xf32>
    %cst_5 = arith.constant 0.000000e+00 : f32
    %6 = vector.broadcast %cst_5 : f32 to vector<32x128xf32>
    %7 = arith.maximumf %5, %6 : vector<32x128xf32>
    %c0_6 = arith.constant 0 : index
    %c0_7 = arith.constant 0 : index
    %8 = vector.load %arg4[%c0_6, %c0_7] : memref<4x32xf32, #tpu.memory_space<vmem>>, vector<4x32xf32>
    %cst_8 = arith.constant dense<0.000000e+00> : vector<4x128xf32>
    %9 = tpu.matmul %8, %7, %cst_8 {dimension_numbers = #tpu.dot_dimension_numbers<[1], [0], [0], [1], [0, 0, 1, 1], [], []>} : vector<4x32xf32>, vector<32x128xf32>, vector<4x128xf32> -> vector<4x128xf32>
    %c0_9 = arith.constant 0 : index
    %c0_10 = arith.constant 0 : index
    %10 = vector.load %arg5[%c0_9, %c0_10] : memref<4x1xf32, #tpu.memory_space<vmem>>, vector<4x1xf32>
    %11 = vector.broadcast %10 : vector<4x1xf32> to vector<4x128xf32>
    %12 = arith.addf %9, %11 : vector<4x128xf32>
    %13 = vector.extract_strided_slice %12 {offsets = [0, 0], sizes = [1, 128], strides = [1, 1]} : vector<4x128xf32> to vector<1x128xf32>
    %14 = vector.extract_strided_slice %12 {offsets = [1, 0], sizes = [1, 128], strides = [1, 1]} : vector<4x128xf32> to vector<1x128xf32>
    %15 = vector.extract_strided_slice %12 {offsets = [2, 0], sizes = [1, 128], strides = [1, 1]} : vector<4x128xf32> to vector<1x128xf32>
    %16 = vector.extract_strided_slice %12 {offsets = [3, 0], sizes = [1, 128], strides = [1, 1]} : vector<4x128xf32> to vector<1x128xf32>
    %17 = arith.maximumf %13, %14 : vector<1x128xf32>
    %18 = arith.maximumf %17, %15 : vector<1x128xf32>
    %19 = arith.maximumf %18, %16 : vector<1x128xf32>
    %20 = vector.broadcast %19 : vector<1x128xf32> to vector<4x128xf32>
    %21 = arith.subf %12, %20 : vector<4x128xf32>
    %22 = math.exp %21 : vector<4x128xf32>
    %23 = vector.extract_strided_slice %22 {offsets = [0, 0], sizes = [1, 128], strides = [1, 1]} : vector<4x128xf32> to vector<1x128xf32>
    %24 = vector.extract_strided_slice %22 {offsets = [1, 0], sizes = [1, 128], strides = [1, 1]} : vector<4x128xf32> to vector<1x128xf32>
    %25 = arith.addf %23, %24 : vector<1x128xf32>
    %26 = vector.extract_strided_slice %22 {offsets = [2, 0], sizes = [1, 128], strides = [1, 1]} : vector<4x128xf32> to vector<1x128xf32>
    %27 = arith.addf %25, %26 : vector<1x128xf32>
    %28 = vector.extract_strided_slice %22 {offsets = [3, 0], sizes = [1, 128], strides = [1, 1]} : vector<4x128xf32> to vector<1x128xf32>
    %29 = arith.addf %27, %28 : vector<1x128xf32>
    %cst_11 = arith.constant 1.000000e+00 : f32
    %30 = vector.broadcast %cst_11 : f32 to vector<1x128xf32>
    %31 = arith.divf %30, %29 : vector<1x128xf32>
    %32 = vector.broadcast %31 : vector<1x128xf32> to vector<4x128xf32>
    %33 = arith.mulf %22, %32 : vector<4x128xf32>
    %c0_12 = arith.constant 0 : index
    %c0_13 = arith.constant 0 : index
    %34 = vector.load %arg6[%c0_12, %c0_13] : memref<4x128xf32, #tpu.memory_space<vmem>>, vector<4x128xf32>
    tpu.vector_store %arg6[%c0_12, %c0_13], %33 {strides = array<i32>} : memref<4x128xf32, #tpu.memory_space<vmem>>, vector<4x128xf32>,
    return
  }
  func.func @transform_0(%arg0: i32) -> (i32, i32) {
    %c0_i32 = arith.constant 0 : i32
    %c0_i32_0 = arith.constant 0 : i32
    return %c0_i32, %arg0 : i32, i32
  }
  func.func @transform_1(%arg0: i32) -> (i32, i32) {
    %c0_i32 = arith.constant 0 : i32
    %c0_i32_0 = arith.constant 0 : i32
    %c0_i32_1 = arith.constant 0 : i32
    return %c0_i32, %c0_i32_0 : i32, i32
  }
  func.func @transform_2(%arg0: i32) -> (i32, i32) {
    %c0_i32 = arith.constant 0 : i32
    %c0_i32_0 = arith.constant 0 : i32
    %c0_i32_1 = arith.constant 0 : i32
    return %c0_i32, %c0_i32_0 : i32, i32
  }
  func.func @transform_3(%arg0: i32) -> (i32, i32) {
    %c0_i32 = arith.constant 0 : i32
    %c0_i32_0 = arith.constant 0 : i32
    %c0_i32_1 = arith.constant 0 : i32
    return %c0_i32, %c0_i32_0 : i32, i32
  }
  func.func @transform_4(%arg0: i32) -> (i32, i32) {
    %c0_i32 = arith.constant 0 : i32
    %c0_i32_0 = arith.constant 0 : i32
    %c0_i32_1 = arith.constant 0 : i32
    return %c0_i32, %c0_i32_0 : i32, i32
  }
  func.func @transform_5(%arg0: i32) -> (i32, i32) {
    %c0_i32 = arith.constant 0 : i32
    %c0_i32_0 = arith.constant 0 : i32
    return %c0_i32, %arg0 : i32, i32
  }
}

</mosaic_0001>

<llo_original>
// kernel: tpu_custom_call.1
$region0: #{tpu_custom_call.1}
  #allocation0 [shape = 'u32[]', space=smem, size = 0x4, offset = 0x4, fixed_abs, tag = 'smem constant byte address 0x4 - core index']
  #allocation1 [shape = 'u32[144,128]{1,0:T(1,128)}', space=vmem, size = 0x12000, scoped, tag = 'internal scratch']
  %s0 = inlined_call_operand.vmem [shape: f32[32,128], index: 0, kind: input, shape index: {}]
  %s1 = inlined_call_operand.hbm [shape: f32[32,32], index: 1, kind: input, shape index: {}]
  %s2 = inlined_call_operand.vmem [shape: f32[32,1], index: 2, kind: input, shape index: {}]
  %s3 = inlined_call_operand.vmem [shape: f32[4,32], index: 3, kind: input, shape index: {}]
  %s4 = inlined_call_operand.vmem [shape: f32[4,1], index: 4, kind: input, shape index: {}]
  %s5 = inlined_call_operand.hbm [shape: f32[4,128], index: 5, kind: output, shape index: {}]
  %s6 = sld [smem:[#allocation0]]
  $region34: #{tpu_custom_call.1} parent=0
    _
  %s8 = ssub.s32 1, %s6
  %s9 = scalar_select 0, %s8, %s6
  $region1: #{tpu_custom_call.1} parent=0
    #allocation2 [shape = 'u8[16384]{0}', space=vmem, size = 0x4000, scoped, tag = 'input window, operand 1, single buffered']
    #allocation3 [shape = 's32[1]{0}', space=sflag, size = 0x4, scoped, tag = 'scoped memory for tpu_custom_call.1']
    #allocation4 [shape = 's32[1]{0}', space=sflag, size = 0x4, scoped, tag = 'scoped memory for tpu_custom_call.1']
    #allocation5 [shape = 'u8[2048]{0}', space=vmem, size = 0x800, scoped, tag = 'output window, operand 0, single buffered']
    %10 = vsyncpa [#allocation3], 0
    %11 = vsyncpa [#allocation4], 0
    // Predicated region
    $region2: #{tpu_custom_call.1} parent=1 // pred_check
      _
    $region3: #{tpu_custom_call.1} parent=1 // pred_check_branch
      %13 = sbr.rel (0) target = $region5
    $region4: #{tpu_custom_call.1} parent=1 // pred_region
      _
    $region5: #{tpu_custom_call.1} parent=1 // pred_fallthru
      _
    // Predicated region
    $region6: #{tpu_custom_call.1} parent=1 // pred_check
      _
    $region7: #{tpu_custom_call.1} parent=1 // pred_check_branch
      %15 = sbr.rel (0) target = $region9
    $region8: #{tpu_custom_call.1} parent=1 // pred_region
      %s17 = ssub.s32 512, 512
      %18 = vsyncadd [#allocation3], %s17
      %s19 = sshll.u32 [#allocation2], 4
      %s20 = int_to_ptr.vmem [resolvable:$true] %s19
      %25 = dma.hbm_to_vmem [thread:$0]  %s1, 512, %s20, [#allocation3], 128, 128, 8
    $region9: #{tpu_custom_call.1} parent=1 // pred_fallthru
      _
    // Predicated region
    $region10: #{tpu_custom_call.1} parent=1 // pred_check
      _
    $region11: #{tpu_custom_call.1} parent=1 // pred_check_branch
      %27 = sbr.rel (0) target = $region13
    $region12: #{tpu_custom_call.1} parent=1 // pred_region
      _
    $region13: #{tpu_custom_call.1} parent=1 // pred_fallthru
      _
    // Predicated region
    $region14: #{tpu_custom_call.1} parent=1 // pred_check
      _
    $region15: #{tpu_custom_call.1} parent=1 // pred_check_branch
      %29 = sbr.rel (0) target = $region17
    $region16: #{tpu_custom_call.1} parent=1 // pred_region
      _
    $region17: #{tpu_custom_call.1} parent=1 // pred_fallthru
      _
    // Predicated region
    $region18: #{tpu_custom_call.1} parent=1 // pred_check
      _
    $region19: #{tpu_custom_call.1} parent=1 // pred_check_branch
      %31 = sbr.rel (0) target = $region21
    $region20: #{tpu_custom_call.1} parent=1 // pred_region
      _
    $region21: #{tpu_custom_call.1} parent=1 // pred_fallthru
      _
    // Predicated region
    $region22: #{tpu_custom_call.1} parent=1 // pred_check
      _
    $region23: #{tpu_custom_call.1} parent=1 // pred_check_branch
      %33 = sbr.rel (0) target = $region25
    $region24: #{tpu_custom_call.1} parent=1 // pred_region
      %34 = dma.done [#allocation3], 512
    $region25: #{tpu_custom_call.1} parent=1 // pred_fallthru
      _
    %v35 = vld [vmem:[%s0] sm:$0xff]
    %v36 = vld [vmem:[%s0 + $0x8] sm:$0xff]
    %v37 = vld [vmem:[%s0 + $0x10] sm:$0xff]
    %v38 = vld [vmem:[%s0 + $0x18] sm:$0xff]
    %v39 = vld [vmem:[#allocation2] sm:$0xff]
    %v40 = vld [vmem:[#allocation2 + $0x8] sm:$0xff]
    %v41 = vld [vmem:[#allocation2 + $0x10] sm:$0xff]
    %v42 = vld [vmem:[#allocation2 + $0x18] sm:$0xff]
    %v43 = vld [vmem:[%s2] sm:$0xff]
    %v44 = vld [vmem:[%s2 + $0x8] sm:$0xff]
    %v45 = vld [vmem:[%s2 + $0x10] sm:$0xff]
    %v46 = vld [vmem:[%s2 + $0x18] sm:$0xff]
    %48 = vset.pattern.permute.xlu0 0
    %49 = vperm.xlu0 %48, %v43
    %v50 = vpop.permute.xlu0 %49
    %53 = vset.pattern.permute.xlu0 0
    %54 = vperm.xlu0 %53, %v44
    %v55 = vpop.permute.xlu0 %54
    %58 = vset.pattern.permute.xlu0 0
    %59 = vperm.xlu0 %58, %v45
    %v60 = vpop.permute.xlu0 %59
    %63 = vset.pattern.permute.xlu0 0
    %64 = vperm.xlu0 %63, %v46
    %v65 = vpop.permute.xlu0 %64
    %vm67 = vcmask 261120
    %v69 = vsel %vm67, %v39, 0
    %v72 = vsel %vm67, %v40, 0
    %v75 = vsel %vm67, %v41, 0
    %v78 = vsel %vm67, %v42, 0
    %80 = vmatprep.subr.mxu0 0.0
    %81 = vmatpush1.msra.mxu0 %v35
    %82 = vmatprep.subr.mxu0 0.0
    %83 = vmatpush1.msra.mxu0 %v36
    %84 = vmatprep.subr.mxu0 0.0
    %85 = vmatpush1.msra.mxu0 %v37
    %86 = vmatprep.subr.mxu0 0.0
    %87 = vmatpush1.msra.mxu0 %v38
    %88 = vmatprep.subr.mxu0 0.0
    %89 = vmatpush1.msra.mxu0 0.0
    %90 = vmatprep.subr.mxu0 0.0
    %91 = vmatpush1.msra.mxu0 0.0
    %92 = vmatprep.subr.mxu0 0.0
    %93 = vmatpush1.msra.mxu0 0.0
    %94 = vmatprep.subr.mxu0 0.0
    %95 = vmatpush1.msra.mxu0 0.0
    %96 = vmatprep.subr.mxu0 0.0
    %97 = vmatpush1.msra.mxu0 0.0
    %98 = vmatprep.subr.mxu0 0.0
    %99 = vmatpush1.msra.mxu0 0.0
    %100 = vmatprep.subr.mxu0 0.0
    %101 = vmatpush1.msra.mxu0 0.0
    %102 = vmatprep.subr.mxu0 0.0
    %103 = vmatpush1.msra.mxu0 0.0
    %104 = vmatprep.subr.mxu0 0.0
    %105 = vmatpush1.msra.mxu0 0.0
    %106 = vmatprep.subr.mxu0 0.0
    %107 = vmatpush1.msra.mxu0 0.0
    %108 = vmatprep.subr.mxu0 0.0
    %109 = vmatpush1.msra.mxu0 0.0
    %110 = vmatprep.subr.mxu0 0.0
    %111 = vmatpush1.msra.mxu0 0.0
    %112 = vmatprep.subr.mxu0 0.0
    %113 = vmatpush1.msra.mxu0 0.0
    %114 = vmatprep.subr.mxu0 0.0
    %115 = vmatpush1.msra.mxu0 0.0
    %116 = vmatprep.subr.mxu0 0.0
    %117 = vmatpush1.msra.mxu0 0.0
    %118 = vmatprep.subr.mxu0 0.0
    %119 = vmatpush1.msra.mxu0 0.0
    %120 = vmatprep.subr.mxu0 0.0
    %121 = vmatpush1.msra.mxu0 0.0
    %122 = vmatprep.subr.mxu0 0.0
    %123 = vmatpush1.msra.mxu0 0.0
    %124 = vmatprep.subr.mxu0 0.0
    %125 = vmatpush1.msra.mxu0 0.0
    %126 = vmatprep.subr.mxu0 0.0
    %127 = vmatpush1.msra.mxu0 0.0
    %128 = vmatprep.subr.mxu0 0.0
    %129 = vmatpush1.msra.mxu0 0.0
    %130 = vmatprep.subr.mxu0 0.0
    %131 = vmatpush1.msra.mxu0 0.0
    %132 = vmatprep.subr.mxu0 0.0
    %133 = vmatpush1.msra.mxu0 0.0
    %134 = vmatprep.subr.mxu0 0.0
    %135 = vmatpush1.msra.mxu0 0.0
    %136 = vmatprep.subr.mxu0 0.0
    %137 = vmatpush1.msra.mxu0 0.0
    %138 = vmatprep.subr.mxu0 0.0
    %139 = vmatpush1.msra.mxu0 0.0
    %140 = vmatprep.subr.mxu0 0.0
    %141 = vmatpush1.msra.mxu0 0.0
    %142 = vmatprep.subr.mxu0 0.0
    %143 = vmatpush1.msra.mxu0 0.0
    %144 = vmatprep.mubr.f32.mxu0 0.0
    %145 = vmatmul.mubr.f32.gmra.mrb[0].mxu0 %v69
    %v146 = vpop.f32.mrb[0].mxu0
    %v147 = vadd.f32 %v50, %v146
    %v148 = vpop.f32.mrb[0].mxu0
    %149 = vmatprep.mubr.f32.mxu0 0.0
    %150 = vmatmul.mubr.f32.gmra.mrb[0].mxu0 %v72
    %v151 = vpop.f32.mrb[0].mxu0
    %v152 = vadd.f32 %v55, %v151
    %v153 = vpop.f32.mrb[0].mxu0
    %154 = vmatprep.mubr.f32.mxu0 0.0
    %155 = vmatmul.mubr.f32.gmra.mrb[0].mxu0 %v75
    %v156 = vpop.f32.mrb[0].mxu0
    %v157 = vadd.f32 %v60, %v156
    %v158 = vpop.f32.mrb[0].mxu0
    %159 = vmatprep.mubr.f32.mxu0 0.0
    %160 = vmatmul.mubr.f32.gmra.mrb[0].mxu0 %v78
    %v161 = vpop.f32.mrb[0].mxu0
    %v162 = vadd.f32 %v65, %v161
    %v163 = vpop.f32.mrb[0].mxu0
    %164 = vdwg.mxu0
    %v165 = vmax.f32 %v147, 0.0
    %v166 = vmax.f32 %v152, 0.0
    %v167 = vmax.f32 %v157, 0.0
    %v168 = vmax.f32 %v162, 0.0
    %v169 = vld [vmem:[%s3] sm:$0xf]
    %v170 = vld [vmem:[%s4] sm:$0xf]
    %172 = vset.pattern.permute.xlu0 0
    %173 = vperm.xlu0 %172, %v170
    %v174 = vpop.permute.xlu0 %173
    %v177 = vsel %vm67, %v169, 0
    %179 = vmatprep.subr.mxu0 0.0
    %180 = vmatpush1.msra.mxu0 %v165
    %181 = vmatprep.subr.mxu0 0.0
    %182 = vmatpush1.msra.mxu0 %v166
    %183 = vmatprep.subr.mxu0 0.0
    %184 = vmatpush1.msra.mxu0 %v167
    %185 = vmatprep.subr.mxu0 0.0
    %186 = vmatpush1.msra.mxu0 %v168
    %187 = vmatprep.subr.mxu0 0.0
    %188 = vmatpush1.msra.mxu0 0.0
    %189 = vmatprep.subr.mxu0 0.0
    %190 = vmatpush1.msra.mxu0 0.0
    %191 = vmatprep.subr.mxu0 0.0
    %192 = vmatpush1.msra.mxu0 0.0
    %193 = vmatprep.subr.mxu0 0.0
    %194 = vmatpush1.msra.mxu0 0.0
    %195 = vmatprep.subr.mxu0 0.0
    %196 = vmatpush1.msra.mxu0 0.0
    %197 = vmatprep.subr.mxu0 0.0
    %198 = vmatpush1.msra.mxu0 0.0
    %199 = vmatprep.subr.mxu0 0.0
    %200 = vmatpush1.msra.mxu0 0.0
    %201 = vmatprep.subr.mxu0 0.0
    %202 = vmatpush1.msra.mxu0 0.0
    %203 = vmatprep.subr.mxu0 0.0
    %204 = vmatpush1.msra.mxu0 0.0
    %205 = vmatprep.subr.mxu0 0.0
    %206 = vmatpush1.msra.mxu0 0.0
    %207 = vmatprep.subr.mxu0 0.0
    %208 = vmatpush1.msra.mxu0 0.0
    %209 = vmatprep.subr.mxu0 0.0
    %210 = vmatpush1.msra.mxu0 0.0
    %211 = vmatprep.subr.mxu0 0.0
    %212 = vmatpush1.msra.mxu0 0.0
    %213 = vmatprep.subr.mxu0 0.0
    %214 = vmatpush1.msra.mxu0 0.0
    %215 = vmatprep.subr.mxu0 0.0
    %216 = vmatpush1.msra.mxu0 0.0
    %217 = vmatprep.subr.mxu0 0.0
    %218 = vmatpush1.msra.mxu0 0.0
    %219 = vmatprep.subr.mxu0 0.0
    %220 = vmatpush1.msra.mxu0 0.0
    %221 = vmatprep.subr.mxu0 0.0
    %222 = vmatpush1.msra.mxu0 0.0
    %223 = vmatprep.subr.mxu0 0.0
    %224 = vmatpush1.msra.mxu0 0.0
    %225 = vmatprep.subr.mxu0 0.0
    %226 = vmatpush1.msra.mxu0 0.0
    %227 = vmatprep.subr.mxu0 0.0
    %228 = vmatpush1.msra.mxu0 0.0
    %229 = vmatprep.subr.mxu0 0.0
    %230 = vmatpush1.msra.mxu0 0.0
    %231 = vmatprep.subr.mxu0 0.0
    %232 = vmatpush1.msra.mxu0 0.0
    %233 = vmatprep.subr.mxu0 0.0
    %234 = vmatpush1.msra.mxu0 0.0
    %235 = vmatprep.subr.mxu0 0.0
    %236 = vmatpush1.msra.mxu0 0.0
    %237 = vmatprep.subr.mxu0 0.0
    %238 = vmatpush1.msra.mxu0 0.0
    %239 = vmatprep.subr.mxu0 0.0
    %240 = vmatpush1.msra.mxu0 0.0
    %241 = vmatprep.subr.mxu0 0.0
    %242 = vmatpush1.msra.mxu0 0.0
    %243 = vmatprep.mubr.f32.mxu0 0.0
    %244 = vmatmul.mubr.f32.gmra.mrb[0].mxu0 %v177
    %v245 = vpop.f32.mrb[0].mxu0
    %v246 = vadd.f32 %v174, %v245
    %v247 = vpop.f32.mrb[0].mxu0
    %248 = vdwg.mxu0
    %v250 = vrot.slane %v246, 1
    %v252 = vmax.f32 %v246, %v250
    %v253 = vrot.slane %v246, 2
    %v255 = vmax.f32 %v252, %v253
    %v256 = vrot.slane %v246, 3
    %v258 = vmax.f32 %v255, %v256
    %v259 = vlaneseq
    %v260 = vshrl.u32 %v259, 7
    %v261 = vsub.s32 0, %v260
    %v262 = vrot.slane %v258, %v261
    %v263 = vsub.f32 %v246, %v262
    %v264 = vmul.f32 %v263, 1.442695
    %v265 = vpow.pop %v264
    %v267 = vrot.slane %v265, 1
    %v269 = vadd.f32 %v265, %v267
    %v270 = vrot.slane %v265, 2
    %v272 = vadd.f32 %v269, %v270
    %v273 = vrot.slane %v265, 3
    %v275 = vadd.f32 %v272, %v273
    %v276 = vrcp.pop %v275
    %v277 = vmul.f32 1.0, %v276
    %v278 = vlaneseq
    %v279 = vshrl.u32 %v278, 7
    %v280 = vsub.s32 0, %v279
    %v281 = vrot.slane %v277, %v280
    %v282 = vmul.f32 %v265, %v281
    %283 = vst [vmem:[#allocation5] sm:$0xf] %v282
    // Predicated region
    $region26: #{tpu_custom_call.1} parent=1 // pred_check
      _
    $region27: #{tpu_custom_call.1} parent=1 // pred_check_branch
      %285 = sbr.rel (0) target = $region29
    $region28: #{tpu_custom_call.1} parent=1 // pred_region
      %s287 = ssub.s32 64, 64
      %288 = vsyncadd [#allocation4], %s287
      %s290 = sshll.u32 [#allocation5], 4
      %s291 = int_to_ptr.vmem [resolvable:$true] %s290
      %293 = dma.vmem_to_hbm [thread:$0]  %s291, 64, %s5, [#allocation4]
    $region29: #{tpu_custom_call.1} parent=1 // pred_fallthru
      _
    // Predicated region
    $region30: #{tpu_custom_call.1} parent=1 // pred_check
      _
    $region31: #{tpu_custom_call.1} parent=1 // pred_check_branch
      %295 = sbr.rel (0) target = $region33
    $region32: #{tpu_custom_call.1} parent=1 // pred_region
      %296 = dma.done [#allocation4], 64
    $region33: #{tpu_custom_call.1} parent=1 // pred_fallthru
      _
    %297 = vsyncpa [#allocation3], 1
    %298 = vsyncpa [#allocation4], 1

</llo_original>
